<compile_context>
chip_gen: v5e
topology: v5e:2x2
jax: 0.10.0
libtpu: 0.0.40
codegen_flags: <defaults>
</compile_context>

<pallas_src>
import jax
import jax.numpy as jnp
from jax.experimental import pallas as pl
from jax.experimental.pallas import tpu as pltpu


def _round_up(n, m):
    return ((n + m - 1) // m) * m


def mlp_kernel(x_ref, w1_ref, b1_ref, w2_ref, b2_ref, w3_ref, b3_ref, o_ref):
    # x arrives f32 / unpadded in the feature dim; cast to the compute dtype
    # (bf16 by default) in-register — one cheap VPU pass, no extra HBM stream.
    x = x_ref[...].astype(w1_ref.dtype)            # (bt, D_in)
    b1 = b1_ref[...]                               # (1, H1p) f32, read once
    b2 = b2_ref[...]                               # (1, H2p) f32
    b3 = b3_ref[...]                               # (1, Cp)  f32

    h1 = jnp.dot(x, w1_ref[...], preferred_element_type=jnp.float32) + b1
    h1 = jnp.maximum(h1, 0.0).astype(w2_ref.dtype)

    h2 = jnp.dot(h1, w2_ref[...], preferred_element_type=jnp.float32) + b2
    h2 = jnp.maximum(h2, 0.0).astype(w3_ref.dtype)

    out = jnp.dot(h2, w3_ref[...], preferred_element_type=jnp.float32) + b3
    o_ref[...] = out.astype(o_ref.dtype)           # lane-dense store (Cp % 128 == 0)


def prepare_params(params, *, compute_dtype=jnp.bfloat16):
    """Pad + cast the weights/biases ONCE (hoisted out of the per-call path).

    Weights -> compute_dtype (bf16 default: half the DMA bytes, native MXU
    dtype); biases stay f32 for the f32 epilogue. Output (N) feature dims are
    zero-padded to multiples of 128 so every matmul/store is lane-dense; w1's
    contraction dim stays unpadded (= input_size) to match the unpadded x
    stream. Zero padding is exact through matmul + bias + ReLU.
    """
    w1, b1, w2, b2, w3, b3 = (params["w1"], params["b1"], params["w2"],
                              params["b2"], params["w3"], params["b3"])
    D_in, H1 = w1.shape
    H2 = w2.shape[1]
    C = w3.shape[1]
    # TODO(synk): for compute-bound layer sizes (>=256) on v6e/v7x's 2x256x256
    # MXU, pad N dims to 256 instead of 128; at small dims it only adds waste.
    H1p, H2p, Cp = (_round_up(d, 128) for d in (H1, H2, C))

    def padw(w, rp, cp):
        r, c = w.shape
        return jnp.pad(w, ((0, rp - r), (0, cp - c))).astype(compute_dtype)

    def padb(b, cp):
        return jnp.pad(b, ((0, 0), (0, cp - b.shape[1]))).astype(jnp.float32)

    return {
        "w1": padw(w1, D_in, H1p), "b1": padb(b1, H1p),
        "w2": padw(w2, H1p, H2p), "b2": padb(b2, H2p),
        "w3": padw(w3, H2p, Cp), "b3": padb(b3, Cp),
        "dims": (D_in, H1, H2, C),
    }


def neural_net_forward(x, prepared, *, batch_tile=512, out_dtype=jnp.float32):
    """x: (B, input_size) f32. prepared: output of prepare_params()."""
    D_in, H1, H2, C = prepared["dims"]
    B = x.shape[0]
    assert x.shape[1] == D_in
    w1, b1, w2, b2, w3, b3 = (prepared["w1"], prepared["b1"], prepared["w2"],
                              prepared["b2"], prepared["w3"], prepared["b3"])
    H1p, H2p, Cp = w1.shape[1], w2.shape[1], w3.shape[1]

    # Batch tile: large (amortizes ~0.35us per grid step), multiple of 16
    # (native bf16 sublane tile), and >=2 grid steps when the batch allows it
    # so the parallel axis splits across v7x's two TensorCores.
    bt = max(16, min(batch_tile, _round_up(B, 16)))
    if B >= 32 and _round_up(B, bt) // bt < 2:
        bt = _round_up((B + 1) // 2, 16)
    Bp = _round_up(B, bt)
    xp = x if Bp == B else jnp.pad(x, ((0, Bp - B), (0, 0)))  # no copy at demo size
    grid = (Bp // bt,)

    # Single-buffer the grid-invariant weights (constant index_map => safe) once
    # they start to matter for VMEM, and raise the scoped limit to match.
    # At demo sizes the defaults are untouched (w_mode=None, limit=None).
    w_itemsize = jnp.dtype(w1.dtype).itemsize
    weight_bytes = (D_in * H1p + H1p * H2p + H2p * Cp) * w_itemsize
    w_mode = pl.Buffered(1) if weight_bytes > (8 << 20) else None
    act_bytes = 2 * bt * (D_in + Cp) * 4 + 2 * bt * (H1p + H2p) * 4
    vmem_est = (1 if w_mode is not None else 2) * weight_bytes + act_bytes + (1 << 20)
    vmem_limit = min(vmem_est, 64 << 20) if vmem_est > (14 << 20) else None
    # TODO(synk): if hidden dims outgrow even single-buffered weights on v7x's
    # 64 MiB VMEM, add a reduction grid axis over the hidden dims (accumulator
    # via pl.when, reduction axis last, marked "arbitrary") instead.

    cost = pl.CostEstimate(
        flops=2 * B * (D_in * H1 + H1 * H2 + H2 * C),
        transcendentals=0,
        bytes_accessed=int(x.size * x.dtype.itemsize
                           + B * C * jnp.dtype(out_dtype).itemsize
                           + weight_bytes + (H1p + H2p + Cp) * 4),
    )

    out = pl.pallas_call(
        mlp_kernel,
        out_shape=jax.ShapeDtypeStruct((Bp, Cp), out_dtype),
        grid_spec=pl.GridSpec(
            grid=grid,
            in_specs=[
                pl.BlockSpec((bt, D_in), lambda i: (i, 0)),   # x: unpadded feature dim
                pl.BlockSpec((D_in, H1p), lambda i: (0, 0), pipeline_mode=w_mode),
                pl.BlockSpec((1, H1p), lambda i: (0, 0)),
                pl.BlockSpec((H1p, H2p), lambda i: (0, 0), pipeline_mode=w_mode),
                pl.BlockSpec((1, H2p), lambda i: (0, 0)),
                pl.BlockSpec((H2p, Cp), lambda i: (0, 0), pipeline_mode=w_mode),
                pl.BlockSpec((1, Cp), lambda i: (0, 0)),
            ],
            out_specs=pl.BlockSpec((bt, Cp), lambda i: (i, 0)),
        ),
        compiler_params=pltpu.CompilerParams(
            dimension_semantics=("parallel",),   # batch axis shards across TCs on v7x
            vmem_limit_bytes=vmem_limit,
        ),
        cost_estimate=cost,
    )(xp, w1, b1, w2, b2, w3, b3)

    # Only the first C of the Cp lane-padded output columns are meaningful.
    return out[:B, :C]


def init_params(key, input_size, hidden_size, n_classes):
    """nn.Linear-style init (uniform(-1/sqrt(fan_in), 1/sqrt(fan_in))).
    Weights stored transposed: (in_features, out_features)."""
    def linear(k, fan_in, fan_out):
        kw, kb = jax.random.split(k)
        bound = 1.0 / jnp.sqrt(fan_in)
        w = jax.random.uniform(kw, (fan_in, fan_out), jnp.float32, -bound, bound)
        b = jax.random.uniform(kb, (1, fan_out), jnp.float32, -bound, bound)
        return w, b

    k1, k2, k3 = jax.random.split(key, 3)
    w1, b1 = linear(k1, input_size, hidden_size[0])
    w2, b2 = linear(k2, hidden_size[0], hidden_size[1])
    w3, b3 = linear(k3, hidden_size[1], n_classes)
    return {"w1": w1, "b1": b1, "w2": w2, "b2": b2, "w3": w3, "b3": b3}


if __name__ == "__main__":
    # Shapes consistent with the module; batch chosen so the wrapper keeps
    # grid=(2,) and exercises the parallel (megacore) axis while staying tiny.
    batch = 256
    input_size = 32
    hidden_size = [64, 32]
    n_classes = 16

    key = jax.random.PRNGKey(0)
    k_x, k_p = jax.random.split(key)
    x = jax.random.normal(k_x, (batch, input_size), jnp.float32)
    params = init_params(k_p, input_size, hidden_size, n_classes)

    prepared = prepare_params(params)            # one-time pad/cast (hoisted)
    out = neural_net_forward(x, prepared)
    out = jax.block_until_ready(out)
    assert out.shape == (batch, n_classes)
    assert out.dtype == jnp.float32

    # Reference 1: bf16-in / f32-accumulate math matching the kernel (tight).
    xb = x.astype(jnp.bfloat16)
    w1b = params["w1"].astype(jnp.bfloat16)
    w2b = params["w2"].astype(jnp.bfloat16)
    w3b = params["w3"].astype(jnp.bfloat16)
    h1 = jnp.maximum(
        jnp.dot(xb, w1b, preferred_element_type=jnp.float32) + params["b1"], 0.0
    ).astype(jnp.bfloat16)
    h2 = jnp.maximum(
        jnp.dot(h1, w2b, preferred_element_type=jnp.float32) + params["b2"], 0.0
    ).astype(jnp.bfloat16)
    ref_bf16 = jnp.dot(h2, w3b, preferred_element_type=jnp.float32) + params["b3"]

    # Reference 2: the true f32 PyTorch-module math (loose tolerance — the
    # bf16 fast path deviates slightly from f32; use compute_dtype=float32 in
    # prepare_params() for exact-f32 semantics).
    h1f = jnp.maximum(x @ params["w1"] + params["b1"], 0.0)
    h2f = jnp.maximum(h1f @ params["w2"] + params["b2"], 0.0)
    ref_f32 = h2f @ params["w3"] + params["b3"]

    assert jnp.allclose(out, ref_bf16, atol=5e-3, rtol=5e-3)
    assert jnp.allclose(out, ref_f32, atol=1e-1, rtol=5e-2)

    print("KERNEL_OK")
</pallas_src>

<mosaic_0001>
module attributes {stable_mosaic.version = 11 : i64} {
  func.func @mlp_kernel(%arg0: i32, %arg1: memref<128x32xf32, #tpu.memory_space<vmem>>, %arg2: memref<32x128xbf16, #tpu.memory_space<vmem>>, %arg3: memref<1x128xf32, #tpu.memory_space<vmem>>, %arg4: memref<128x128xbf16, #tpu.memory_space<vmem>>, %arg5: memref<1x128xf32, #tpu.memory_space<vmem>>, %arg6: memref<128x128xbf16, #tpu.memory_space<vmem>>, %arg7: memref<1x128xf32, #tpu.memory_space<vmem>>, %arg8: memref<128x128xf32, #tpu.memory_space<vmem>>) attributes {dimension_semantics = [#tpu.dimension_semantics<parallel>], iteration_bounds = array<i64: 2>, scalar_prefetch = 0 : i64, scratch_operands = 0 : i64, tpu.core_type = #tpu.core_type<tc>, window_params = [{transform_indices = @transform_0, window_bounds = array<i64: 128, 32>}, {pipeline_mode = #tpu.pipeline_mode<synchronous>, transform_indices = @transform_1, window_bounds = array<i64: 32, 128>}, {pipeline_mode = #tpu.pipeline_mode<synchronous>, transform_indices = @transform_2, window_bounds = array<i64: 1, 128>}, {pipeline_mode = #tpu.pipeline_mode<synchronous>, transform_indices = @transform_3, window_bounds = array<i64: 128, 128>}, {pipeline_mode = #tpu.pipeline_mode<synchronous>, transform_indices = @transform_4, window_bounds = array<i64: 1, 128>}, {pipeline_mode = #tpu.pipeline_mode<synchronous>, transform_indices = @transform_5, window_bounds = array<i64: 128, 128>}, {pipeline_mode = #tpu.pipeline_mode<synchronous>, transform_indices = @transform_6, window_bounds = array<i64: 1, 128>}, {transform_indices = @transform_7, window_bounds = array<i64: 128, 128>}]} {
    %c0 = arith.constant 0 : index
    %c0_0 = arith.constant 0 : index
    %0 = vector.load %arg1[%c0, %c0_0] : memref<128x32xf32, #tpu.memory_space<vmem>>, vector<128x32xf32>
    %1 = arith.truncf %0 : vector<128x32xf32> to vector<128x32xbf16>
    %c0_1 = arith.constant 0 : index
    %c0_2 = arith.constant 0 : index
    %2 = vector.load %arg3[%c0_1, %c0_2] : memref<1x128xf32, #tpu.memory_space<vmem>>, vector<1x128xf32>
    %c0_3 = arith.constant 0 : index
    %c0_4 = arith.constant 0 : index
    %3 = vector.load %arg5[%c0_3, %c0_4] : memref<1x128xf32, #tpu.memory_space<vmem>>, vector<1x128xf32>
    %c0_5 = arith.constant 0 : index
    %c0_6 = arith.constant 0 : index
    %4 = vector.load %arg7[%c0_5, %c0_6] : memref<1x128xf32, #tpu.memory_space<vmem>>, vector<1x128xf32>
    %c0_7 = arith.constant 0 : index
    %c0_8 = arith.constant 0 : index
    %5 = vector.load %arg2[%c0_7, %c0_8] : memref<32x128xbf16, #tpu.memory_space<vmem>>, vector<32x128xbf16>
    %cst = arith.constant dense<0.000000e+00> : vector<128x128xf32>
    %6 = tpu.matmul %1, %5, %cst {dimension_numbers = #tpu.dot_dimension_numbers<[1], [0], [0], [1], [0, 0, 1, 1], [], []>} : vector<128x32xbf16>, vector<32x128xbf16>, vector<128x128xf32> -> vector<128x128xf32>
    %7 = vector.broadcast %2 : vector<1x128xf32> to vector<128x128xf32>
    %8 = arith.addf %6, %7 : vector<128x128xf32>
    %cst_9 = arith.constant 0.000000e+00 : f32
    %9 = vector.broadcast %cst_9 : f32 to vector<128x128xf32>
    %10 = arith.maximumf %8, %9 : vector<128x128xf32>
    %11 = arith.truncf %10 : vector<128x128xf32> to vector<128x128xbf16>
    %c0_10 = arith.constant 0 : index
    %c0_11 = arith.constant 0 : index
    %12 = vector.load %arg4[%c0_10, %c0_11] : memref<128x128xbf16, #tpu.memory_space<vmem>>, vector<128x128xbf16>
    %cst_12 = arith.constant dense<0.000000e+00> : vector<128x128xf32>
    %13 = tpu.matmul %11, %12, %cst_12 {dimension_numbers = #tpu.dot_dimension_numbers<[1], [0], [0], [1], [0, 0, 1, 1], [], []>} : vector<128x128xbf16>, vector<128x128xbf16>, vector<128x128xf32> -> vector<128x128xf32>
    %14 = vector.broadcast %3 : vector<1x128xf32> to vector<128x128xf32>
    %15 = arith.addf %13, %14 : vector<128x128xf32>
    %cst_13 = arith.constant 0.000000e+00 : f32
    %16 = vector.broadcast %cst_13 : f32 to vector<128x128xf32>
    %17 = arith.maximumf %15, %16 : vector<128x128xf32>
    %18 = arith.truncf %17 : vector<128x128xf32> to vector<128x128xbf16>
    %c0_14 = arith.constant 0 : index
    %c0_15 = arith.constant 0 : index
    %19 = vector.load %arg6[%c0_14, %c0_15] : memref<128x128xbf16, #tpu.memory_space<vmem>>, vector<128x128xbf16>
    %cst_16 = arith.constant dense<0.000000e+00> : vector<128x128xf32>
    %20 = tpu.matmul %18, %19, %cst_16 {dimension_numbers = #tpu.dot_dimension_numbers<[1], [0], [0], [1], [0, 0, 1, 1], [], []>} : vector<128x128xbf16>, vector<128x128xbf16>, vector<128x128xf32> -> vector<128x128xf32>
    %21 = vector.broadcast %4 : vector<1x128xf32> to vector<128x128xf32>
    %22 = arith.addf %20, %21 : vector<128x128xf32>
    %c0_17 = arith.constant 0 : index
    %c0_18 = arith.constant 0 : index
    %23 = vector.load %arg8[%c0_17, %c0_18] : memref<128x128xf32, #tpu.memory_space<vmem>>, vector<128x128xf32>
    tpu.vector_store %arg8[%c0_17, %c0_18], %22 {strides = array<i32>} : memref<128x128xf32, #tpu.memory_space<vmem>>, vector<128x128xf32>,
    return
  }
  func.func @transform_0(%arg0: i32) -> (i32, i32) {
    %c0_i32 = arith.constant 0 : i32
    %c0_i32_0 = arith.constant 0 : i32
    return %arg0, %c0_i32 : i32, i32
  }
  func.func @transform_1(%arg0: i32) -> (i32, i32) {
    %c0_i32 = arith.constant 0 : i32
    %c0_i32_0 = arith.constant 0 : i32
    %c0_i32_1 = arith.constant 0 : i32
    return %c0_i32, %c0_i32_0 : i32, i32
  }
  func.func @transform_2(%arg0: i32) -> (i32, i32) {
    %c0_i32 = arith.constant 0 : i32
    %c0_i32_0 = arith.constant 0 : i32
    %c0_i32_1 = arith.constant 0 : i32
    return %c0_i32, %c0_i32_0 : i32, i32
  }
  func.func @transform_3(%arg0: i32) -> (i32, i32) {
    %c0_i32 = arith.constant 0 : i32
    %c0_i32_0 = arith.constant 0 : i32
    %c0_i32_1 = arith.constant 0 : i32
    return %c0_i32, %c0_i32_0 : i32, i32
  }
  func.func @transform_4(%arg0: i32) -> (i32, i32) {
    %c0_i32 = arith.constant 0 : i32
    %c0_i32_0 = arith.constant 0 : i32
    %c0_i32_1 = arith.constant 0 : i32
    return %c0_i32, %c0_i32_0 : i32, i32
  }
  func.func @transform_5(%arg0: i32) -> (i32, i32) {
    %c0_i32 = arith.constant 0 : i32
    %c0_i32_0 = arith.constant 0 : i32
    %c0_i32_1 = arith.constant 0 : i32
    return %c0_i32, %c0_i32_0 : i32, i32
  }
  func.func @transform_6(%arg0: i32) -> (i32, i32) {
    %c0_i32 = arith.constant 0 : i32
    %c0_i32_0 = arith.constant 0 : i32
    %c0_i32_1 = arith.constant 0 : i32
    return %c0_i32, %c0_i32_0 : i32, i32
  }
  func.func @transform_7(%arg0: i32) -> (i32, i32) {
    %c0_i32 = arith.constant 0 : i32
    %c0_i32_0 = arith.constant 0 : i32
    return %arg0, %c0_i32 : i32, i32
  }
}

</mosaic_0001>

<llo_original>
// kernel: tpu_custom_call.1
$region0: #{tpu_custom_call.1}
  #allocation0 [shape = 'u32[]', space=smem, size = 0x4, offset = 0x4, fixed_abs, tag = 'smem constant byte address 0x4 - core index']
  #allocation1 [shape = 'u32[72,128]{1,0:T(1,128)}', space=vmem, size = 0x9000, scoped, tag = 'internal scratch']
  %s0 = inlined_call_operand.vmem [shape: f32[256,32], index: 0, kind: input, shape index: {}]
  %s1 = inlined_call_operand.vmem [shape: bf16[32,128], index: 1, kind: input, shape index: {}]
  %s2 = inlined_call_operand.vmem [shape: f32[1,128], index: 2, kind: input, shape index: {}]
  %s3 = inlined_call_operand.vmem [shape: bf16[128,128], index: 3, kind: input, shape index: {}]
  %s4 = inlined_call_operand.vmem [shape: f32[1,128], index: 4, kind: input, shape index: {}]
  %s5 = inlined_call_operand.vmem [shape: bf16[128,128], index: 5, kind: input, shape index: {}]
  %s6 = inlined_call_operand.vmem [shape: f32[1,128], index: 6, kind: input, shape index: {}]
  %s7 = inlined_call_operand.hbm [shape: f32[256,128], index: 7, kind: output, shape index: {}]
  %s8 = sld [smem:[#allocation0]]
  $region61: #{tpu_custom_call.1} parent=0
    _
  %s10 = ssub.s32 1, %s8
  %s11 = scalar_select 0, %s10, %s8
  $region1: #{tpu_custom_call.1} parent=0
    #allocation2 [shape = 'u8[131072]{0}', space=vmem, size = 0x20000, scoped, tag = 'output window, operand 0']
    #allocation3 [shape = 's32[2]{0}', space=sflag, size = 0x8, scoped, tag = 'scoped memory for tpu_custom_call.1']
    %12 = vsyncpa [#allocation3], 0
    %s13 = scalar_lea.sflag [#allocation3], 1
    %14 = vsyncpa %s13, 0
    loop: start=0, step=1, limit=4
    $region2: #{tpu_custom_call.1} parent=1 // loop_pre_header
      _
    $region3: #{tpu_custom_call.1} parent=1 // loop_header
      %s16 = sphi 0, %s20
      %p17 = scmp.ge.s32.totalorder %s16, 4
      %s26 = sphi 0, %s28
      %s29 = sphi 0, %s26
      %s30 = sphi 0, %s29
      %s46 = sphi 0, %s30
      %s50 = sphi 0, %s50
      %s52 = sphi 0, %s50
      %s53 = sphi 0, %s52
      %s67 = sphi 0, %s53
      %s71 = sphi 0, %s71
      %s73 = sphi 0, %s71
      %s74 = sphi 0, %s73
      %s88 = sphi 0, %s74
      %s92 = sphi 0, %s92
      %s94 = sphi 0, %s92
      %s95 = sphi 0, %s94
      %s109 = sphi 0, %s95
      %s113 = sphi 0, %s113
      %s115 = sphi 0, %s113
      %s116 = sphi 0, %s115
      %s130 = sphi 0, %s116
      %s134 = sphi 0, %s134
      %s136 = sphi 0, %s134
      %s137 = sphi 0, %s136
      %s151 = sphi 0, %s137
      %s155 = sphi 0, %s155
      %s157 = sphi 0, %s155
      %s158 = sphi 0, %s157
      %s172 = sphi 0, %s158
      %s178 = sphi 0, %s180
      %s181 = sphi 0, %s178
      %s182 = sphi 0, %s181
      %s198 = sphi 0, %s182
    $region4: #{tpu_custom_call.1} parent=1 // loop_header_branch
      %19 = sbr.rel (%p17) target = $region8
    $region5: #{tpu_custom_call.1} parent=1 // loop_body
      %s21 = ssub.s32 %s16, 1
      %s22 = ssub.s32 %s16, 2
      %s23 = sadd.s32 %s16, 1
      %s24 = ssub.s32 %s16, %s23
      %p25 = scmp.eq.s32.totalorder %s24, 0
      %s27 = sadd.s32 %s26, 1
      %s28 = scalar_select %p25, %s26, %s27
      %p31 = pneg %p25
      %p32 = scmp.eq.s32.totalorder %s16, 1
      %p33 = por %p31, %p32
      %p34 = scmp.ne.s32.totalorder %s26, %s29
      %p35 = scmp.eq.s32.totalorder %s16, 0
      %p36 = por %p34, %p35
      %p37 = scmp.ne.s32.totalorder %s26, %s29
      %p38 = scmp.eq.s32.totalorder %s21, 1
      %p39 = por %p37, %p38
      %p40 = scmp.ne.s32.totalorder %s29, %s30
      %p41 = scmp.eq.s32.totalorder %s21, 0
      %p42 = por %p40, %p41
      %p43 = scmp.ne.s32.totalorder %s29, %s30
      %p44 = scmp.eq.s32.totalorder %s22, 1
      %p45 = por %p43, %p44
      %p47 = scmp.ne.s32.totalorder %s30, %s46
      %p48 = scmp.eq.s32.totalorder %s22, 0
      %p49 = por %p47, %p48
      %s51 = sadd.s32 %s50, 1
      %p54 = scmp.eq.s32.totalorder %s16, 1
      %p55 = scmp.ne.s32.totalorder %s50, %s52
      %p56 = scmp.eq.s32.totalorder %s16, 0
      %p57 = por %p55, %p56
      %p58 = scmp.ne.s32.totalorder %s50, %s52
      %p59 = scmp.eq.s32.totalorder %s21, 1
      %p60 = por %p58, %p59
      %p61 = scmp.ne.s32.totalorder %s52, %s53
      %p62 = scmp.eq.s32.totalorder %s21, 0
      %p63 = por %p61, %p62
      %p64 = scmp.ne.s32.totalorder %s52, %s53
      %p65 = scmp.eq.s32.totalorder %s22, 1
      %p66 = por %p64, %p65
      %p68 = scmp.ne.s32.totalorder %s53, %s67
      %p69 = scmp.eq.s32.totalorder %s22, 0
      %p70 = por %p68, %p69
      %s72 = sadd.s32 %s71, 1
      %p75 = scmp.eq.s32.totalorder %s16, 1
      %p76 = scmp.ne.s32.totalorder %s71, %s73
      %p77 = scmp.eq.s32.totalorder %s16, 0
      %p78 = por %p76, %p77
      %p79 = scmp.ne.s32.totalorder %s71, %s73
      %p80 = scmp.eq.s32.totalorder %s21, 1
      %p81 = por %p79, %p80
      %p82 = scmp.ne.s32.totalorder %s73, %s74
      %p83 = scmp.eq.s32.totalorder %s21, 0
      %p84 = por %p82, %p83
      %p85 = scmp.ne.s32.totalorder %s73, %s74
      %p86 = scmp.eq.s32.totalorder %s22, 1
      %p87 = por %p85, %p86
      %p89 = scmp.ne.s32.totalorder %s74, %s88
      %p90 = scmp.eq.s32.totalorder %s22, 0
      %p91 = por %p89, %p90
      %s93 = sadd.s32 %s92, 1
      %p96 = scmp.eq.s32.totalorder %s16, 1
      %p97 = scmp.ne.s32.totalorder %s92, %s94
      %p98 = scmp.eq.s32.totalorder %s16, 0
      %p99 = por %p97, %p98
      %p100 = scmp.ne.s32.totalorder %s92, %s94
      %p101 = scmp.eq.s32.totalorder %s21, 1
      %p102 = por %p100, %p101
      %p103 = scmp.ne.s32.totalorder %s94, %s95
      %p104 = scmp.eq.s32.totalorder %s21, 0
      %p105 = por %p103, %p104
      %p106 = scmp.ne.s32.totalorder %s94, %s95
      %p107 = scmp.eq.s32.totalorder %s22, 1
      %p108 = por %p106, %p107
      %p110 = scmp.ne.s32.totalorder %s95, %s109
      %p111 = scmp.eq.s32.totalorder %s22, 0
      %p112 = por %p110, %p111
      %s114 = sadd.s32 %s113, 1
      %p117 = scmp.eq.s32.totalorder %s16, 1
      %p118 = scmp.ne.s32.totalorder %s113, %s115
      %p119 = scmp.eq.s32.totalorder %s16, 0
      %p120 = por %p118, %p119
      %p121 = scmp.ne.s32.totalorder %s113, %s115
      %p122 = scmp.eq.s32.totalorder %s21, 1
      %p123 = por %p121, %p122
      %p124 = scmp.ne.s32.totalorder %s115, %s116
      %p125 = scmp.eq.s32.totalorder %s21, 0
      %p126 = por %p124, %p125
      %p127 = scmp.ne.s32.totalorder %s115, %s116
      %p128 = scmp.eq.s32.totalorder %s22, 1
      %p129 = por %p127, %p128
      %p131 = scmp.ne.s32.totalorder %s116, %s130
      %p132 = scmp.eq.s32.totalorder %s22, 0
      %p133 = por %p131, %p132
      %s135 = sadd.s32 %s134, 1
      %p138 = scmp.eq.s32.totalorder %s16, 1
      %p139 = scmp.ne.s32.totalorder %s134, %s136
      %p140 = scmp.eq.s32.totalorder %s16, 0
      %p141 = por %p139, %p140
      %p142 = scmp.ne.s32.totalorder %s134, %s136
      %p143 = scmp.eq.s32.totalorder %s21, 1
      %p144 = por %p142, %p143
      %p145 = scmp.ne.s32.totalorder %s136, %s137
      %p146 = scmp.eq.s32.totalorder %s21, 0
      %p147 = por %p145, %p146
      %p148 = scmp.ne.s32.totalorder %s136, %s137
      %p149 = scmp.eq.s32.totalorder %s22, 1
      %p150 = por %p148, %p149
      %p152 = scmp.ne.s32.totalorder %s137, %s151
      %p153 = scmp.eq.s32.totalorder %s22, 0
      %p154 = por %p152, %p153
      %s156 = sadd.s32 %s155, 1
      %p159 = scmp.eq.s32.totalorder %s16, 1
      %p160 = scmp.ne.s32.totalorder %s155, %s157
      %p161 = scmp.eq.s32.totalorder %s16, 0
      %p162 = por %p160, %p161
      %p163 = scmp.ne.s32.totalorder %s155, %s157
      %p164 = scmp.eq.s32.totalorder %s21, 1
      %p165 = por %p163, %p164
      %p166 = scmp.ne.s32.totalorder %s157, %s158
      %p167 = scmp.eq.s32.totalorder %s21, 0
      %p168 = por %p166, %p167
      %p169 = scmp.ne.s32.totalorder %s157, %s158
      %p170 = scmp.eq.s32.totalorder %s22, 1
      %p171 = por %p169, %p170
      %p173 = scmp.ne.s32.totalorder %s158, %s172
      %p174 = scmp.eq.s32.totalorder %s22, 0
      %p175 = por %p173, %p174
      %s176 = ssub.s32 %s16, %s23
      %p177 = scmp.eq.s32.totalorder %s176, 0
      %s179 = sadd.s32 %s178, 1
      %s180 = scalar_select %p177, %s178, %s179
      %p183 = pneg %p177
      %p184 = scmp.eq.s32.totalorder %s16, 1
      %p185 = por %p183, %p184
      %p186 = scmp.ne.s32.totalorder %s178, %s181
      %p187 = scmp.eq.s32.totalorder %s16, 0
      %p188 = por %p186, %p187
      %p189 = scmp.ne.s32.totalorder %s178, %s181
      %p190 = scmp.eq.s32.totalorder %s21, 1
      %p191 = por %p189, %p190
      %p192 = scmp.ne.s32.totalorder %s181, %s182
      %p193 = scmp.eq.s32.totalorder %s21, 0
      %p194 = por %p192, %p193
      %p195 = scmp.ne.s32.totalorder %s181, %s182
      %p196 = scmp.eq.s32.totalorder %s22, 1
      %p197 = por %p195, %p196
      %p199 = scmp.ne.s32.totalorder %s182, %s198
      %p200 = scmp.eq.s32.totalorder %s22, 0
      %p201 = por %p199, %p200
      %p202 = scmp.le.s32.totalorder 1, %s16
      %p203 = scmp.lt.s32.totalorder %s16, 3
      %p204 = pnand %p202, %p203
      %p205 = pneg %p204
      // Predicated region
      $region9: #{tpu_custom_call.1} parent=5 // pred_check
        _
      $region10: #{tpu_custom_call.1} parent=5 // pred_check_branch
        %207 = sbr.rel (%p204) target = $region12
      $region11: #{tpu_custom_call.1} parent=5 // pred_region
        %s208 = ssub.s32 %s16, 1
        // Predicated region
        $region13: #{tpu_custom_call.1} parent=11 // pred_check
          %p209 = pneg %p63
        $region14: #{tpu_custom_call.1} parent=11 // pred_check_branch
          %211 = sbr.rel (%p209) target = $region16
        $region15: #{tpu_custom_call.1} parent=11 // pred_region
          _
        $region16: #{tpu_custom_call.1} parent=11 // pred_fallthru
          _
        // Predicated region
        $region17: #{tpu_custom_call.1} parent=11 // pred_check
          %p212 = pneg %p84
        $region18: #{tpu_custom_call.1} parent=11 // pred_check_branch
          %214 = sbr.rel (%p212) target = $region20
        $region19: #{tpu_custom_call.1} parent=11 // pred_region
          _
        $region20: #{tpu_custom_call.1} parent=11 // pred_fallthru
          _
        // Predicated region
        $region21: #{tpu_custom_call.1} parent=11 // pred_check
          %p215 = pneg %p105
        $region22: #{tpu_custom_call.1} parent=11 // pred_check_branch
          %217 = sbr.rel (%p215) target = $region24
        $region23: #{tpu_custom_call.1} parent=11 // pred_region
          _
        $region24: #{tpu_custom_call.1} parent=11 // pred_fallthru
          _
        // Predicated region
        $region25: #{tpu_custom_call.1} parent=11 // pred_check
          %p218 = pneg %p126
        $region26: #{tpu_custom_call.1} parent=11 // pred_check_branch
          %220 = sbr.rel (%p218) target = $region28
        $region27: #{tpu_custom_call.1} parent=11 // pred_region
          _
        $region28: #{tpu_custom_call.1} parent=11 // pred_fallthru
          _
        // Predicated region
        $region29: #{tpu_custom_call.1} parent=11 // pred_check
          %p221 = pneg %p147
        $region30: #{tpu_custom_call.1} parent=11 // pred_check_branch
          %223 = sbr.rel (%p221) target = $region32
        $region31: #{tpu_custom_call.1} parent=11 // pred_region
          _
        $region32: #{tpu_custom_call.1} parent=11 // pred_fallthru
          _
        // Predicated region
        $region33: #{tpu_custom_call.1} parent=11 // pred_check
          %p224 = pneg %p168
        $region34: #{tpu_custom_call.1} parent=11 // pred_check_branch
          %226 = sbr.rel (%p224) target = $region36
        $region35: #{tpu_custom_call.1} parent=11 // pred_region
          _
        $region36: #{tpu_custom_call.1} parent=11 // pred_fallthru
          _
      $region12: #{tpu_custom_call.1} parent=5 // pred_fallthru
        _
      %p227 = scmp.lt.s32.totalorder %s16, 2
      // Predicated region
      $region37: #{tpu_custom_call.1} parent=5 // pred_check
        %p228 = pneg %p227
      $region38: #{tpu_custom_call.1} parent=5 // pred_check_branch
        %230 = sbr.rel (%p228) target = $region40
      $region39: #{tpu_custom_call.1} parent=5 // pred_region
        // Predicated region
        $region41: #{tpu_custom_call.1} parent=39 // pred_check
          %p231 = pneg %p36
        $region42: #{tpu_custom_call.1} parent=39 // pred_check_branch
          %233 = sbr.rel (%p231) target = $region44
        $region43: #{tpu_custom_call.1} parent=39 // pred_region
          %s234 = smul.u32 16, %s16
          %p235 = scmp.lt.s32.totalorder %s234, 31
          %s236 = scalar_select %p235, %s234, 31
          %s237 = smul.addr %s236, 8
          %s238 = scalar_lea.vmem %s0, %s237
          %s239 = smul.u32 16, %s16
        $region44: #{tpu_custom_call.1} parent=39 // pred_fallthru
          _
      $region40: #{tpu_custom_call.1} parent=5 // pred_fallthru
        _
      %p240 = scmp.le.s32.totalorder 1, %s16
      %p241 = scmp.lt.s32.totalorder %s16, 3
      %p242 = pnand %p240, %p241
      %p243 = pneg %p242
      // Predicated region
      $region45: #{tpu_custom_call.1} parent=5 // pred_check
        _
      $region46: #{tpu_custom_call.1} parent=5 // pred_check_branch
        %245 = sbr.rel (%p242) target = $region48
      $region47: #{tpu_custom_call.1} parent=5 // pred_region
        %s246 = ssub.s32 %s16, 1
        %s247 = smul.u32 16, %s21
        %p248 = scmp.lt.s32.totalorder %s247, 31
        %s249 = scalar_select %p248, %s247, 31
        %s250 = smul.addr %s249, 8
        %s251 = scalar_lea.vmem %s0, %s250
        %p252 = pneg %p42
        %p253 = pneg %p39
        %p254 = pneg %p63
        %p255 = pneg %p60
        %p256 = pneg %p84
        %p257 = pneg %p81
        %p258 = pneg %p105
        %p259 = pneg %p102
        %p260 = pneg %p126
        %p261 = pneg %p123
        %p262 = pneg %p147
        %p263 = pneg %p144
        %p264 = pneg %p168
        %p265 = pneg %p165
        %p266 = pneg %p194
        %p267 = pneg %p191
        %s268 = sand.u32 %s181, 1
        %s269 = scalar_lea.sflag [#allocation3], %s268
        %s270 = sand.u32 %s181, 1
        %s271 = smul.addr %s270, 128
        %s272 = scalar_lea.vmem [#allocation2], %s271
        %s273 = smul.u32 16, %s21
        %p274 = scmp.lt.s32.totalorder %s273, 31
        %s275 = scalar_select %p274, %s273, 31
        %s276 = smul.addr %s275, 8
        %s277 = scalar_lea.vmem %s0, %s276
        %s278 = smul.u32 16, %s21
        %s279 = smul.u32 16, %s21
        %v281 = vld [vmem:[%s277] sm:$0xff]
        %v282 = vld [vmem:[%s277 + $0x8] sm:$0xff]
        %v283 = vld [vmem:[%s277 + $0x10] sm:$0xff]
        %v284 = vld [vmem:[%s277 + $0x18] sm:$0xff]
        %v285 = vld [vmem:[%s277 + $0x20] sm:$0xff]
        %v286 = vld [vmem:[%s277 + $0x28] sm:$0xff]
        %v287 = vld [vmem:[%s277 + $0x30] sm:$0xff]
        %v288 = vld [vmem:[%s277 + $0x38] sm:$0xff]
        %v289 = vld [vmem:[%s277 + $0x40] sm:$0xff]
        %v290 = vld [vmem:[%s277 + $0x48] sm:$0xff]
        %v291 = vld [vmem:[%s277 + $0x50] sm:$0xff]
        %v292 = vld [vmem:[%s277 + $0x58] sm:$0xff]
        %v293 = vld [vmem:[%s277 + $0x60] sm:$0xff]
        %v294 = vld [vmem:[%s277 + $0x68] sm:$0xff]
        %v295 = vld [vmem:[%s277 + $0x70] sm:$0xff]
        %v296 = vld [vmem:[%s277 + $0x78] sm:$0xff]
        %v297 = vpack.c.bf16 %v282, %v281
        %v298 = vpack.c.bf16 %v284, %v283
        %v299 = vpack.c.bf16 %v286, %v285
        %v300 = vpack.c.bf16 %v288, %v287
        %v301 = vpack.c.bf16 %v290, %v289
        %v302 = vpack.c.bf16 %v292, %v291
        %v303 = vpack.c.bf16 %v294, %v293
        %v304 = vpack.c.bf16 %v296, %v295
        %v305 = vld [vmem:[%s2] sm:$0x1]
        %v306 = vld [vmem:[%s4] sm:$0x1]
        %v307 = vld [vmem:[%s6] sm:$0x1]
        %v308 = vld [vmem:[%s1] sm:$0xf]
        %v309 = vld [vmem:[%s1 + $0x4] sm:$0xf]
        %v310 = vld [vmem:[%s1 + $0x8] sm:$0xf]
        %v311 = vld [vmem:[%s1 + $0xc] sm:$0xf]
        %v313 = vperm.slane %v305, 0
        %v319 = vunpack.c.l.b16 %v308
        %v320 = vunpack.c.l.b16 %v309
        %v321 = vunpack.c.l.b16 %v310
        %v322 = vunpack.c.l.b16 %v311
        %v323 = vpack.c.b16 %v320, %v319
        %v324 = vpack.c.b16 %v322, %v321
        %vm327 = vcmask 261120
        %v329 = vsel %vm327, %v297, 0
        %v332 = vsel %vm327, %v298, 0
        %v335 = vsel %vm327, %v299, 0
        %v338 = vsel %vm327, %v300, 0
        %v341 = vsel %vm327, %v301, 0
        %v344 = vsel %vm327, %v302, 0
        %v347 = vsel %vm327, %v303, 0
        %v350 = vsel %vm327, %v304, 0
        %352 = vmatpush.bf16.msra.mxu0 0
        %353 = vmatpush.bf16.msra.mxu0 0
        %354 = vmatpush.bf16.msra.mxu0 0
        %355 = vmatpush.bf16.msra.mxu0 0
        %356 = vmatpush.bf16.msra.mxu0 0
        %357 = vmatpush.bf16.msra.mxu0 0
        %358 = vmatpush.bf16.msra.mxu0 %v324
        %359 = vmatpush.bf16.msra.mxu0 %v323
        %360 = vmatmul.bf16.gmra.mxu0 %v329
        %v361 = vpop.f32.mrf.mxu0
        %v362 = vadd.f32 %v313, %v361
        %v363 = vpop.f32.mrf.mxu0
        %v364 = vadd.f32 %v313, %v363
        %365 = vmatmul.bf16.gmra.mxu0 %v332
        %v366 = vpop.f32.mrf.mxu0
        %v367 = vadd.f32 %v313, %v366
        %v368 = vpop.f32.mrf.mxu0
        %v369 = vadd.f32 %v313, %v368
        %370 = vmatmul.bf16.gmra.mxu0 %v335
        %v371 = vpop.f32.mrf.mxu0
        %v372 = vadd.f32 %v313, %v371
        %v373 = vpop.f32.mrf.mxu0
        %v374 = vadd.f32 %v313, %v373
        %375 = vmatmul.bf16.gmra.mxu0 %v338
        %v376 = vpop.f32.mrf.mxu0
        %v377 = vadd.f32 %v313, %v376
        %v378 = vpop.f32.mrf.mxu0
        %v379 = vadd.f32 %v313, %v378
        %380 = vmatmul.bf16.gmra.mxu0 %v341
        %v381 = vpop.f32.mrf.mxu0
        %v382 = vadd.f32 %v313, %v381
        %v383 = vpop.f32.mrf.mxu0
        %v384 = vadd.f32 %v313, %v383
        %385 = vmatmul.bf16.gmra.mxu0 %v344
        %v386 = vpop.f32.mrf.mxu0
        %v387 = vadd.f32 %v313, %v386
        %v388 = vpop.f32.mrf.mxu0
        %v389 = vadd.f32 %v313, %v388
        %390 = vmatmul.bf16.gmra.mxu0 %v347
        %v391 = vpop.f32.mrf.mxu0
        %v392 = vadd.f32 %v313, %v391
        %v393 = vpop.f32.mrf.mxu0
        %v394 = vadd.f32 %v313, %v393
        %395 = vmatmul.bf16.gmra.mxu0 %v350
        %v396 = vpop.f32.mrf.mxu0
        %v397 = vadd.f32 %v313, %v396
        %v398 = vpop.f32.mrf.mxu0
        %v399 = vadd.f32 %v313, %v398
        %400 = vdwg.mxu0
        %v401 = vmax.f32 %v362, 0.0
        %v402 = vmax.f32 %v364, 0.0
        %v403 = vmax.f32 %v367, 0.0
        %v404 = vmax.f32 %v369, 0.0
        %v405 = vmax.f32 %v372, 0.0
        %v406 = vmax.f32 %v374, 0.0
        %v407 = vmax.f32 %v377, 0.0
        %v408 = vmax.f32 %v379, 0.0
        %v409 = vmax.f32 %v382, 0.0
        %v410 = vmax.f32 %v384, 0.0
        %v411 = vmax.f32 %v387, 0.0
        %v412 = vmax.f32 %v389, 0.0
        %v413 = vmax.f32 %v392, 0.0
        %v414 = vmax.f32 %v394, 0.0
        %v415 = vmax.f32 %v397, 0.0
        %v416 = vmax.f32 %v399, 0.0
        %v417 = vpack.c.bf16 %v402, %v401
        %v418 = vpack.c.bf16 %v404, %v403
        %v419 = vpack.c.bf16 %v406, %v405
        %v420 = vpack.c.bf16 %v408, %v407
        %v421 = vpack.c.bf16 %v410, %v409
        %v422 = vpack.c.bf16 %v412, %v411
        %v423 = vpack.c.bf16 %v414, %v413
        %v424 = vpack.c.bf16 %v416, %v415
        %v425 = vld [vmem:[%s3] sm:$0xf]
        %v426 = vld [vmem:[%s3 + $0x4] sm:$0xf]
        %v427 = vld [vmem:[%s3 + $0x8] sm:$0xf]
        %v428 = vld [vmem:[%s3 + $0xc] sm:$0xf]
        %v429 = vld [vmem:[%s3 + $0x10] sm:$0xf]
        %v430 = vld [vmem:[%s3 + $0x14] sm:$0xf]
        %v431 = vld [vmem:[%s3 + $0x18] sm:$0xf]
        %v432 = vld [vmem:[%s3 + $0x1c] sm:$0xf]
        %v433 = vld [vmem:[%s3 + $0x20] sm:$0xf]
        %v434 = vld [vmem:[%s3 + $0x24] sm:$0xf]
        %v435 = vld [vmem:[%s3 + $0x28] sm:$0xf]
        %v436 = vld [vmem:[%s3 + $0x2c] sm:$0xf]
        %v437 = vld [vmem:[%s3 + $0x30] sm:$0xf]
        %v438 = vld [vmem:[%s3 + $0x34] sm:$0xf]
        %v439 = vld [vmem:[%s3 + $0x38] sm:$0xf]
        %v440 = vld [vmem:[%s3 + $0x3c] sm:$0xf]
        %v442 = vperm.slane %v306, 0
        %v460 = vunpack.c.l.b16 %v425
        %v461 = vunpack.c.l.b16 %v426
        %v462 = vunpack.c.l.b16 %v427
        %v463 = vunpack.c.l.b16 %v428
        %v464 = vunpack.c.l.b16 %v429
        %v465 = vunpack.c.l.b16 %v430
        %v466 = vunpack.c.l.b16 %v431
        %v467 = vunpack.c.l.b16 %v432
        %v468 = vunpack.c.l.b16 %v433
        %v469 = vunpack.c.l.b16 %v434
        %v470 = vunpack.c.l.b16 %v435
        %v471 = vunpack.c.l.b16 %v436
        %v472 = vunpack.c.l.b16 %v437
        %v473 = vunpack.c.l.b16 %v438
        %v474 = vunpack.c.l.b16 %v439
        %v475 = vunpack.c.l.b16 %v440
        %v476 = vpack.c.b16 %v461, %v460
        %v477 = vpack.c.b16 %v463, %v462
        %v478 = vpack.c.b16 %v465, %v464
        %v479 = vpack.c.b16 %v467, %v466
        %v480 = vpack.c.b16 %v469, %v468
        %v481 = vpack.c.b16 %v471, %v470
        %v482 = vpack.c.b16 %v473, %v472
        %v483 = vpack.c.b16 %v475, %v474
        %492 = vmatpush.bf16.msra.mxu0 %v483
        %493 = vmatpush.bf16.msra.mxu0 %v482
        %494 = vmatpush.bf16.msra.mxu0 %v481
        %495 = vmatpush.bf16.msra.mxu0 %v480
        %496 = vmatpush.bf16.msra.mxu0 %v479
        %497 = vmatpush.bf16.msra.mxu0 %v478
        %498 = vmatpush.bf16.msra.mxu0 %v477
        %499 = vmatpush.bf16.msra.mxu0 %v476
        %500 = vmatmul.bf16.gmra.mxu0 %v417
        %v501 = vpop.f32.mrf.mxu0
        %v502 = vadd.f32 %v442, %v501
        %v503 = vpop.f32.mrf.mxu0
        %v504 = vadd.f32 %v442, %v503
        %505 = vmatmul.bf16.gmra.mxu0 %v418
        %v506 = vpop.f32.mrf.mxu0
        %v507 = vadd.f32 %v442, %v506
        %v508 = vpop.f32.mrf.mxu0
        %v509 = vadd.f32 %v442, %v508
        %510 = vmatmul.bf16.gmra.mxu0 %v419
        %v511 = vpop.f32.mrf.mxu0
        %v512 = vadd.f32 %v442, %v511
        %v513 = vpop.f32.mrf.mxu0
        %v514 = vadd.f32 %v442, %v513
        %515 = vmatmul.bf16.gmra.mxu0 %v420
        %v516 = vpop.f32.mrf.mxu0
        %v517 = vadd.f32 %v442, %v516
        %v518 = vpop.f32.mrf.mxu0
        %v519 = vadd.f32 %v442, %v518
        %520 = vmatmul.bf16.gmra.mxu0 %v421
        %v521 = vpop.f32.mrf.mxu0
        %v522 = vadd.f32 %v442, %v521
        %v523 = vpop.f32.mrf.mxu0
        %v524 = vadd.f32 %v442, %v523
        %525 = vmatmul.bf16.gmra.mxu0 %v422
        %v526 = vpop.f32.mrf.mxu0
        %v527 = vadd.f32 %v442, %v526
        %v528 = vpop.f32.mrf.mxu0
        %v529 = vadd.f32 %v442, %v528
        %530 = vmatmul.bf16.gmra.mxu0 %v423
        %v531 = vpop.f32.mrf.mxu0
        %v532 = vadd.f32 %v442, %v531
        %v533 = vpop.f32.mrf.mxu0
        %v534 = vadd.f32 %v442, %v533
        %535 = vmatmul.bf16.gmra.mxu0 %v424
        %v536 = vpop.f32.mrf.mxu0
        %v537 = vadd.f32 %v442, %v536
        %v538 = vpop.f32.mrf.mxu0
        %v539 = vadd.f32 %v442, %v538
        %540 = vdwg.mxu0
        %v541 = vmax.f32 %v502, 0.0
        %v542 = vmax.f32 %v504, 0.0
        %v543 = vmax.f32 %v507, 0.0
        %v544 = vmax.f32 %v509, 0.0
        %v545 = vmax.f32 %v512, 0.0
        %v546 = vmax.f32 %v514, 0.0
        %v547 = vmax.f32 %v517, 0.0
        %v548 = vmax.f32 %v519, 0.0
        %v549 = vmax.f32 %v522, 0.0
        %v550 = vmax.f32 %v524, 0.0
        %v551 = vmax.f32 %v527, 0.0
        %v552 = vmax.f32 %v529, 0.0
        %v553 = vmax.f32 %v532, 0.0
        %v554 = vmax.f32 %v534, 0.0
        %v555 = vmax.f32 %v537, 0.0
        %v556 = vmax.f32 %v539, 0.0
        %v557 = vpack.c.bf16 %v542, %v541
        %v558 = vpack.c.bf16 %v544, %v543
        %v559 = vpack.c.bf16 %v546, %v545
        %v560 = vpack.c.bf16 %v548, %v547
        %v561 = vpack.c.bf16 %v550, %v549
        %v562 = vpack.c.bf16 %v552, %v551
        %v563 = vpack.c.bf16 %v554, %v553
        %v564 = vpack.c.bf16 %v556, %v555
        %v565 = vld [vmem:[%s5] sm:$0xf]
        %v566 = vld [vmem:[%s5 + $0x4] sm:$0xf]
        %v567 = vld [vmem:[%s5 + $0x8] sm:$0xf]
        %v568 = vld [vmem:[%s5 + $0xc] sm:$0xf]
        %v569 = vld [vmem:[%s5 + $0x10] sm:$0xf]
        %v570 = vld [vmem:[%s5 + $0x14] sm:$0xf]
        %v571 = vld [vmem:[%s5 + $0x18] sm:$0xf]
        %v572 = vld [vmem:[%s5 + $0x1c] sm:$0xf]
        %v573 = vld [vmem:[%s5 + $0x20] sm:$0xf]
        %v574 = vld [vmem:[%s5 + $0x24] sm:$0xf]
        %v575 = vld [vmem:[%s5 + $0x28] sm:$0xf]
        %v576 = vld [vmem:[%s5 + $0x2c] sm:$0xf]
        %v577 = vld [vmem:[%s5 + $0x30] sm:$0xf]
        %v578 = vld [vmem:[%s5 + $0x34] sm:$0xf]
        %v579 = vld [vmem:[%s5 + $0x38] sm:$0xf]
        %v580 = vld [vmem:[%s5 + $0x3c] sm:$0xf]
        %v582 = vperm.slane %v307, 0
        %v600 = vunpack.c.l.b16 %v565
        %v601 = vunpack.c.l.b16 %v566
        %v602 = vunpack.c.l.b16 %v567
        %v603 = vunpack.c.l.b16 %v568
        %v604 = vunpack.c.l.b16 %v569
        %v605 = vunpack.c.l.b16 %v570
        %v606 = vunpack.c.l.b16 %v571
        %v607 = vunpack.c.l.b16 %v572
        %v608 = vunpack.c.l.b16 %v573
        %v609 = vunpack.c.l.b16 %v574
        %v610 = vunpack.c.l.b16 %v575
        %v611 = vunpack.c.l.b16 %v576
        %v612 = vunpack.c.l.b16 %v577
        %v613 = vunpack.c.l.b16 %v578
        %v614 = vunpack.c.l.b16 %v579
        %v615 = vunpack.c.l.b16 %v580
        %v616 = vpack.c.b16 %v601, %v600
        %v617 = vpack.c.b16 %v603, %v602
        %v618 = vpack.c.b16 %v605, %v604
        %v619 = vpack.c.b16 %v607, %v606
        %v620 = vpack.c.b16 %v609, %v608
        %v621 = vpack.c.b16 %v611, %v610
        %v622 = vpack.c.b16 %v613, %v612
        %v623 = vpack.c.b16 %v615, %v614
        %632 = vmatpush.bf16.msra.mxu0 %v623
        %633 = vmatpush.bf16.msra.mxu0 %v622
        %634 = vmatpush.bf16.msra.mxu0 %v621
        %635 = vmatpush.bf16.msra.mxu0 %v620
        %636 = vmatpush.bf16.msra.mxu0 %v619
        %637 = vmatpush.bf16.msra.mxu0 %v618
        %638 = vmatpush.bf16.msra.mxu0 %v617
        %639 = vmatpush.bf16.msra.mxu0 %v616
        %640 = vmatmul.bf16.gmra.mxu0 %v557
        %v641 = vpop.f32.mrf.mxu0
        %v642 = vadd.f32 %v582, %v641
        %v643 = vpop.f32.mrf.mxu0
        %v644 = vadd.f32 %v582, %v643
        %645 = vmatmul.bf16.gmra.mxu0 %v558
        %v646 = vpop.f32.mrf.mxu0
        %v647 = vadd.f32 %v582, %v646
        %v648 = vpop.f32.mrf.mxu0
        %v649 = vadd.f32 %v582, %v648
        %650 = vmatmul.bf16.gmra.mxu0 %v559
        %v651 = vpop.f32.mrf.mxu0
        %v652 = vadd.f32 %v582, %v651
        %v653 = vpop.f32.mrf.mxu0
        %v654 = vadd.f32 %v582, %v653
        %655 = vmatmul.bf16.gmra.mxu0 %v560
        %v656 = vpop.f32.mrf.mxu0
        %v657 = vadd.f32 %v582, %v656
        %v658 = vpop.f32.mrf.mxu0
        %v659 = vadd.f32 %v582, %v658
        %660 = vmatmul.bf16.gmra.mxu0 %v561
        %v661 = vpop.f32.mrf.mxu0
        %v662 = vadd.f32 %v582, %v661
        %v663 = vpop.f32.mrf.mxu0
        %v664 = vadd.f32 %v582, %v663
        %665 = vmatmul.bf16.gmra.mxu0 %v562
        %v666 = vpop.f32.mrf.mxu0
        %v667 = vadd.f32 %v582, %v666
        %v668 = vpop.f32.mrf.mxu0
        %v669 = vadd.f32 %v582, %v668
        %670 = vmatmul.bf16.gmra.mxu0 %v563
        %v671 = vpop.f32.mrf.mxu0
        %v672 = vadd.f32 %v582, %v671
        %v673 = vpop.f32.mrf.mxu0
        %v674 = vadd.f32 %v582, %v673
        %675 = vmatmul.bf16.gmra.mxu0 %v564
        %v676 = vpop.f32.mrf.mxu0
        %v677 = vadd.f32 %v582, %v676
        %v678 = vpop.f32.mrf.mxu0
        %v679 = vadd.f32 %v582, %v678
        %680 = vdwg.mxu0
        %681 = vst [vmem:[%s272] sm:$0xff] %v642
        %682 = vst [vmem:[%s272 + $0x8] sm:$0xff] %v644
        %683 = vst [vmem:[%s272 + $0x10] sm:$0xff] %v647
        %684 = vst [vmem:[%s272 + $0x18] sm:$0xff] %v649
        %685 = vst [vmem:[%s272 + $0x20] sm:$0xff] %v652
        %686 = vst [vmem:[%s272 + $0x28] sm:$0xff] %v654
        %687 = vst [vmem:[%s272 + $0x30] sm:$0xff] %v657
        %688 = vst [vmem:[%s272 + $0x38] sm:$0xff] %v659
        %689 = vst [vmem:[%s272 + $0x40] sm:$0xff] %v662
        %690 = vst [vmem:[%s272 + $0x48] sm:$0xff] %v664
        %691 = vst [vmem:[%s272 + $0x50] sm:$0xff] %v667
        %692 = vst [vmem:[%s272 + $0x58] sm:$0xff] %v669
        %693 = vst [vmem:[%s272 + $0x60] sm:$0xff] %v672
        %694 = vst [vmem:[%s272 + $0x68] sm:$0xff] %v674
        %695 = vst [vmem:[%s272 + $0x70] sm:$0xff] %v677
        %696 = vst [vmem:[%s272 + $0x78] sm:$0xff] %v679
        %s697 = sand.u32 %s181, 1
        %s698 = scalar_lea.sflag [#allocation3], %s697
        %s699 = sand.u32 %s181, 1
        %s700 = smul.addr %s699, 128
        %s701 = scalar_lea.vmem [#allocation2], %s700
        // Predicated region
        $region49: #{tpu_custom_call.1} parent=47 // pred_check
          %p702 = pneg %p191
        $region50: #{tpu_custom_call.1} parent=47 // pred_check_branch
          %704 = sbr.rel (%p702) target = $region52
        $region51: #{tpu_custom_call.1} parent=47 // pred_region
          %s705 = smul.u32 16, %s21
          %707 = vsyncadd %s698, 0
          %s708 = smul.addr %s705, 8
          %s709 = scalar_lea.hbm %s7, %s708
          %s710 = sshll.u32 %s701, 4
          %s711 = int_to_ptr.vmem [resolvable:$true] %s710
          %s712 = sshll.u32 %s709, 4
          %s713 = int_to_ptr.hbm [resolvable:$true] %s712
          %718 = dma.vmem_to_hbm [thread:$0]  %s711, 2048, %s713, %s698, 128, 128, 8
        $region52: #{tpu_custom_call.1} parent=47 // pred_fallthru
          _
      $region48: #{tpu_custom_call.1} parent=5 // pred_fallthru
        _
      %p719 = scmp.le.s32.totalorder 2, %s16
      // Predicated region
      $region53: #{tpu_custom_call.1} parent=5 // pred_check
        %p720 = pneg %p719
      $region54: #{tpu_custom_call.1} parent=5 // pred_check_branch
        %722 = sbr.rel (%p720) target = $region56
      $region55: #{tpu_custom_call.1} parent=5 // pred_region
        %s723 = ssub.s32 %s16, 2
        // Predicated region
        $region57: #{tpu_custom_call.1} parent=55 // pred_check
          %p724 = pneg %p197
        $region58: #{tpu_custom_call.1} parent=55 // pred_check_branch
          %726 = sbr.rel (%p724) target = $region60
        $region59: #{tpu_custom_call.1} parent=55 // pred_region
          %s727 = sand.u32 %s182, 1
          %s728 = scalar_lea.sflag [#allocation3], %s727
          %s729 = sand.u32 %s182, 1
          %s730 = smul.addr %s729, 128
          %s731 = scalar_lea.vmem [#allocation2], %s730
          %733 = dma.done %s728, 2048
        $region60: #{tpu_custom_call.1} parent=55 // pred_fallthru
          _
      $region56: #{tpu_custom_call.1} parent=5 // pred_fallthru
        _
    $region6: #{tpu_custom_call.1} parent=1 // loop_footer
      %s20 = sadd.s32 1, %s16
    $region7: #{tpu_custom_call.1} parent=1 // loop_footer_branch
      %15 = sbr.rel target = $region3
    $region8: #{tpu_custom_call.1} parent=1 // loop_exit
      _
    %734 = vsyncpa [#allocation3], 1
    %s735 = scalar_lea.sflag [#allocation3], 1
    %736 = vsyncpa %s735, 1

</llo_original>
